<compile_context>
chip_gen: v7x
topology: tpu7x:2x2x1
jax: 0.10.0
libtpu: 0.0.40
codegen_flags: <defaults>
</compile_context>

<pallas_src>
import jax
import jax.numpy as jnp
from jax.experimental import pallas as pl
from jax.experimental.pallas import tpu as pltpu


def _round_up(x, m):
    return ((x + m - 1) // m) * m


def _pad2_bytes(r, c, itemsize=4):
    """Bytes of an f32 (r, c) VMEM buffer after (8, 128) tile padding."""
    return _round_up(max(r, 1), 8) * _round_up(max(c, 1), 128) * itemsize


def _weight_vmem_bytes(H, wq_cols):
    # wq (H, wq_cols), wka/wkv (H, H), bias (2, H), ws (2, H)
    return (_pad2_bytes(H, wq_cols)
            + 2 * _pad2_bytes(H, H)
            + 2 * _pad2_bytes(2, H))


def _choose_tile(N, H, wq_cols, tm_target):
    """Pick (tm, grid):  even number (>=2) of balanced steps, VMEM-capped tm."""
    if N < 16:
        return N, 1                      # single full-extent block
    steps = max(2, pl.cdiv(N, tm_target))
    steps += steps % 2                   # even step count: balanced on v7x's 2 cores
    tm = _round_up(pl.cdiv(N, steps), 8)

    # Cap tm so double-buffered (q, ka, kv, ctx, attn) tiles + weights stay
    # ~<= 26 MiB (v7x physical VMEM is 64 MiB; leave compiler-scratch headroom).
    weight_bytes = _weight_vmem_bytes(H, wq_cols)
    per_row = 2 * 4 * (4 * _round_up(H, 128) + 128)      # double-buffered bytes/row
    avail = (26 << 20) - 2 * weight_bytes
    if avail > 0:
        tm_cap = max(8, (avail // per_row) // 8 * 8)
        tm = min(tm, tm_cap)
    return tm, pl.cdiv(N, tm)


def _additive_attention_kernel(
    q_ref, ka_ref, kv_ref,          # (TM, H) row tiles
    wq_ref,                         # (H, 2*Hp) fused, lane-aligned query weight
    wka_ref, wkv_ref,               # (H, H)  key weights (pre-transposed)
    b_ref,                          # (2, H)  additive biases [bias_a; bias_v]
    ws_ref,                         # (2, H)  score row-weights [wsa; wsv]
    sb_ref,                         # (2,)    score biases in SMEM
    ctx_ref, attn_ref,              # outputs: (TM, H), (TM, 2)
):
    H = wka_ref.shape[0]
    Hp = wq_ref.shape[1] // 2       # lane-aligned half width (>= H, multiple of 128)

    q = q_ref[...].astype(jnp.float32)
    ka = ka_ref[...].astype(jnp.float32)
    kv = kv_ref[...].astype(jnp.float32)

    # Fused query projection: one MXU pass producing both branch terms; each
    # half starts on a 128-lane (vreg) boundary so the split is free.
    qh = jnp.dot(q, wq_ref[...], preferred_element_type=jnp.float32)   # (TM, 2*Hp)
    qa = qh[:, :H]
    qv = qh[:, Hp:Hp + H]

    # hidden_a = tanh(key_proj_a(key_a) + query_proj_a(query) + bias_a)
    ha = jnp.tanh(
        jnp.dot(ka, wka_ref[...], preferred_element_type=jnp.float32)
        + qa
        + b_ref[0:1, :]
    )
    # hidden_v = tanh(key_proj_v(key_v) + query_proj_v(query) + bias_v)
    hv = jnp.tanh(
        jnp.dot(kv, wkv_ref[...], preferred_element_type=jnp.float32)
        + qv
        + b_ref[1:2, :]
    )

    # Score projections as VPU multiply + lane (XLU) reduction; scalar biases
    # come from SMEM (a one-column matmul would waste the MXU).
    sa = jnp.sum(ha * ws_ref[0:1, :], axis=-1, keepdims=True) + sb_ref[0]
    sv = jnp.sum(hv * ws_ref[1:2, :], axis=-1, keepdims=True) + sb_ref[1]

    # attn = softmax([2*score_a, 2*score_v], axis=-1)  (stable 2-way softmax)
    sa2 = 2.0 * sa
    sv2 = 2.0 * sv
    m = jnp.maximum(sa2, sv2)
    ea = jnp.exp(sa2 - m)
    ev = jnp.exp(sv2 - m)
    denom = ea + ev
    # EUP approx reciprocal + one Newton step: full f32 accuracy, no divide
    # sequence on the VALU (the refinement is 2 ops on a (TM, 1) column).
    inv = pl.reciprocal(denom, approx=True)
    inv = inv * (2.0 - denom * inv)
    a0 = ea * inv                  # (TM, 1)
    a1 = ev * inv                  # (TM, 1)

    # context = attn[:, 0:1] * key_a + attn[:, 1:2] * key_v
    ctx_ref[...] = (a0 * ka + a1 * kv).astype(ctx_ref.dtype)
    attn_ref[...] = jnp.concatenate([a0, a1], axis=-1).astype(attn_ref.dtype)


def prepare_params(params):
    """Hoist the per-call weight transposes / packing (do this once)."""
    H = params["wka"].shape[0]
    Hp = _round_up(H, 128)   # lane-align each fused half so the qa/qv split is free
    # PyTorch Linear computes x @ W.T -> pre-transpose; place the two query
    # projections in lane-aligned halves of one (H, 2*Hp) weight.
    wq = jnp.zeros((H, 2 * Hp), jnp.float32)
    wq = wq.at[:, :H].set(params["wqa"].T.astype(jnp.float32))
    wq = wq.at[:, Hp:Hp + H].set(params["wqv"].T.astype(jnp.float32))
    return {
        "wq": wq,
        "wka": params["wka"].T.astype(jnp.float32),
        "wkv": params["wkv"].T.astype(jnp.float32),
        "bias": jnp.stack([params["bias_a"], params["bias_v"]], axis=0),   # (2, H)
        "ws": jnp.concatenate([params["wsa"], params["wsv"]], axis=0),     # (2, H)
        "sb": jnp.concatenate([params["bsa"], params["bsv"]], axis=0),     # (2,)
    }


def additive_attention(query, key_a, key_v, prepared, *, tm=1024):
    """Pallas implementation of AdditiveAttention.forward.

    query, key_a, key_v: (B, L, H) float32
    prepared: output of prepare_params()
    Returns (context (B, L, H), attn (B, L, 2)).
    """
    B, L, H = query.shape
    N = B * L
    wq_cols = prepared["wq"].shape[1]

    tm, grid = _choose_tile(N, H, wq_cols, tm)

    # No zero-padding and no output slicing: the trailing partial block (if
    # any) is handled by Pallas' masked partial-block DMA.  Rows are fully
    # independent, so garbage in the unread tail never reaches HBM.
    q2 = query.reshape(N, H)
    ka2 = key_a.reshape(N, H)
    kv2 = key_v.reshape(N, H)

    # Accurate VMEM request: ~2x the real (8,128)-padded, double-buffered
    # working set + 1 MiB headroom.  Only set when it exceeds the smallest
    # default scoped limit; capped well under v7x's 64 MiB physical VMEM.
    weight_bytes = _weight_vmem_bytes(H, wq_cols)
    tile_bytes = 4 * _pad2_bytes(tm, H) + _pad2_bytes(tm, 2)
    working = 2 * (tile_bytes + weight_bytes)
    request = 2 * working + (1 << 20)
    vmem_limit = None if request <= (16 << 20) else min(request, 56 << 20)

    # Advisory cost estimate for XLA's scheduler.
    flops = 2 * N * H * (wq_cols + 2 * H) + 12 * N * H
    transcendentals = 2 * N * H + 2 * N
    bytes_accessed = 4 * (4 * N * H + 2 * N) + 4 * (H * wq_cols + 2 * H * H + 4 * H + 2)
    cost = pl.CostEstimate(flops=int(flops),
                           transcendentals=int(transcendentals),
                           bytes_accessed=int(bytes_accessed))

    row_spec = pl.BlockSpec((tm, H), lambda i: (i, 0))
    wq_spec = pl.BlockSpec((H, wq_cols), lambda i: (0, 0))
    whh_spec = pl.BlockSpec((H, H), lambda i: (0, 0))
    w2h_spec = pl.BlockSpec((2, H), lambda i: (0, 0))
    smem_spec = pl.BlockSpec(memory_space=pltpu.MemorySpace.SMEM)

    ctx, attn = pl.pallas_call(
        _additive_attention_kernel,
        out_shape=(
            jax.ShapeDtypeStruct((N, H), query.dtype),
            jax.ShapeDtypeStruct((N, 2), jnp.float32),
        ),
        grid=(grid,),
        in_specs=[
            row_spec, row_spec, row_spec,        # q, key_a, key_v
            wq_spec,                             # fused query weight
            whh_spec, whh_spec,                  # wka_t, wkv_t
            w2h_spec,                            # biases (2, H)
            w2h_spec,                            # score row-weights (2, H)
            smem_spec,                           # score biases (2,) in SMEM
        ],
        out_specs=(
            pl.BlockSpec((tm, H), lambda i: (i, 0)),
            pl.BlockSpec((tm, 2), lambda i: (i, 0)),
        ),
        compiler_params=pltpu.CompilerParams(
            dimension_semantics=("parallel",),
            vmem_limit_bytes=vmem_limit,
        ),
        cost_estimate=cost,
    )(
        q2, ka2, kv2,
        prepared["wq"], prepared["wka"], prepared["wkv"],
        prepared["bias"], prepared["ws"], prepared["sb"],
    )

    return ctx.reshape(B, L, H), attn.reshape(B, L, 2)


def _reference(query, key_a, key_v, params):
    """Pure-JAX reference mirroring the PyTorch forward."""
    def lin(x, w):  # x @ W.T
        return jnp.einsum("blh,oh->blo", x, w)

    ha = jnp.tanh(lin(key_a, params["wka"]) + lin(query, params["wqa"]) + params["bias_a"])
    sa = (jnp.einsum("blh,oh->blo", ha, params["wsa"]) + params["bsa"])[..., 0]
    hv = jnp.tanh(lin(key_v, params["wkv"]) + lin(query, params["wqv"]) + params["bias_v"])
    sv = (jnp.einsum("blh,oh->blo", hv, params["wsv"]) + params["bsv"])[..., 0]
    score = jnp.stack([sa, sv], axis=-1)
    attn = jax.nn.softmax(score * 2.0, axis=-1)
    context = attn[..., 0:1] * key_a + attn[..., 1:2] * key_v
    return context, attn


def _init_params(key, hidden_dim):
    ks = jax.random.split(key, 10)
    u = lambda k, shape, lim: jax.random.uniform(k, shape, jnp.float32, -lim, lim)
    lim = 1.0 / jnp.sqrt(hidden_dim)
    return {
        "wqa": u(ks[0], (hidden_dim, hidden_dim), lim),
        "wka": u(ks[1], (hidden_dim, hidden_dim), lim),
        "bias_a": u(ks[2], (hidden_dim,), 0.1),
        "wsa": u(ks[3], (1, hidden_dim), lim),
        "bsa": u(ks[4], (1,), lim),
        "wqv": u(ks[5], (hidden_dim, hidden_dim), lim),
        "wkv": u(ks[6], (hidden_dim, hidden_dim), lim),
        "bias_v": u(ks[7], (hidden_dim,), 0.1),
        "wsv": u(ks[8], (1, hidden_dim), lim),
        "bsv": u(ks[9], (1,), lim),
    }


if __name__ == "__main__":
    # --- Primary small test (shapes implied by the module) ---------------
    B, L, H = 2, 8, 32
    key = jax.random.PRNGKey(0)
    k_q, k_a, k_v, k_p = jax.random.split(key, 4)

    query = jax.random.normal(k_q, (B, L, H), jnp.float32)
    key_a = jax.random.normal(k_a, (B, L, H), jnp.float32)
    key_v = jax.random.normal(k_v, (B, L, H), jnp.float32)
    params = _init_params(k_p, H)
    prepared = prepare_params(params)

    ctx, attn = additive_attention(query, key_a, key_v, prepared)
    jax.block_until_ready((ctx, attn))

    ctx_ref, attn_ref = _reference(query, key_a, key_v, params)
    assert jnp.allclose(ctx, ctx_ref, atol=1e-4, rtol=1e-4), "context mismatch"
    assert jnp.allclose(attn, attn_ref, atol=1e-4, rtol=1e-4), "attn mismatch"

    # --- Secondary test: multi-step grid + trailing partial block, H=128 --
    B2, L2, H2 = 2, 603, 128          # N = 1206 -> tm = 608, grid = 2 (partial tail)
    k2 = jax.random.PRNGKey(1)
    k_q2, k_a2, k_v2, k_p2 = jax.random.split(k2, 4)
    query2 = jax.random.normal(k_q2, (B2, L2, H2), jnp.float32)
    key_a2 = jax.random.normal(k_a2, (B2, L2, H2), jnp.float32)
    key_v2 = jax.random.normal(k_v2, (B2, L2, H2), jnp.float32)
    params2 = _init_params(k_p2, H2)
    prepared2 = prepare_params(params2)

    ctx2, attn2 = additive_attention(query2, key_a2, key_v2, prepared2)
    jax.block_until_ready((ctx2, attn2))
    ctx2_ref, attn2_ref = _reference(query2, key_a2, key_v2, params2)
    assert jnp.allclose(ctx2, ctx2_ref, atol=1e-4, rtol=1e-4), "context mismatch (large)"
    assert jnp.allclose(attn2, attn2_ref, atol=1e-4, rtol=1e-4), "attn mismatch (large)"

    print("KERNEL_OK")
</pallas_src>

<mosaic_0001>
module attributes {stable_mosaic.version = 11 : i64} {
  func.func @_additive_attention_kernel(%arg0: i32, %arg1: memref<8x32xf32, #tpu.memory_space<vmem>>, %arg2: memref<8x32xf32, #tpu.memory_space<vmem>>, %arg3: memref<8x32xf32, #tpu.memory_space<vmem>>, %arg4: memref<32x256xf32, #tpu.memory_space<vmem>>, %arg5: memref<32x32xf32, #tpu.memory_space<vmem>>, %arg6: memref<32x32xf32, #tpu.memory_space<vmem>>, %arg7: memref<2x32xf32, #tpu.memory_space<vmem>>, %arg8: memref<2x32xf32, #tpu.memory_space<vmem>>, %arg9: memref<2xf32, #tpu.memory_space<smem>>, %arg10: memref<8x32xf32, #tpu.memory_space<vmem>>, %arg11: memref<8x2xf32, #tpu.memory_space<vmem>>) attributes {dimension_semantics = [#tpu.dimension_semantics<parallel>], iteration_bounds = array<i64: 2>, scalar_prefetch = 0 : i64, scratch_operands = 0 : i64, tpu.core_type = #tpu.core_type<tc>, window_params = [{transform_indices = @transform_0, window_bounds = array<i64: 8, 32>}, {transform_indices = @transform_1, window_bounds = array<i64: 8, 32>}, {transform_indices = @transform_2, window_bounds = array<i64: 8, 32>}, {pipeline_mode = #tpu.pipeline_mode<synchronous>, transform_indices = @transform_3, window_bounds = array<i64: 32, 256>}, {pipeline_mode = #tpu.pipeline_mode<synchronous>, transform_indices = @transform_4, window_bounds = array<i64: 32, 32>}, {pipeline_mode = #tpu.pipeline_mode<synchronous>, transform_indices = @transform_5, window_bounds = array<i64: 32, 32>}, {pipeline_mode = #tpu.pipeline_mode<synchronous>, transform_indices = @transform_6, window_bounds = array<i64: 2, 32>}, {pipeline_mode = #tpu.pipeline_mode<synchronous>, transform_indices = @transform_7, window_bounds = array<i64: 2, 32>}, {transform_indices = @transform_8, window_bounds = array<i64: 2>}, {transform_indices = @transform_9, window_bounds = array<i64: 8, 32>}, {transform_indices = @transform_10, window_bounds = array<i64: 8, 2>}]} {
    %c0 = arith.constant 0 : index
    %c0_0 = arith.constant 0 : index
    %0 = vector.load %arg1[%c0, %c0_0] : memref<8x32xf32, #tpu.memory_space<vmem>>, vector<8x32xf32>
    %c0_1 = arith.constant 0 : index
    %c0_2 = arith.constant 0 : index
    %1 = vector.load %arg2[%c0_1, %c0_2] : memref<8x32xf32, #tpu.memory_space<vmem>>, vector<8x32xf32>
    %c0_3 = arith.constant 0 : index
    %c0_4 = arith.constant 0 : index
    %2 = vector.load %arg3[%c0_3, %c0_4] : memref<8x32xf32, #tpu.memory_space<vmem>>, vector<8x32xf32>
    %c0_5 = arith.constant 0 : index
    %c0_6 = arith.constant 0 : index
    %3 = vector.load %arg4[%c0_5, %c0_6] : memref<32x256xf32, #tpu.memory_space<vmem>>, vector<32x256xf32>
    %cst = arith.constant dense<0.000000e+00> : vector<8x256xf32>
    %4 = tpu.matmul %0, %3, %cst {dimension_numbers = #tpu.dot_dimension_numbers<[1], [0], [0], [1], [0, 0, 1, 1], [], []>} : vector<8x32xf32>, vector<32x256xf32>, vector<8x256xf32> -> vector<8x256xf32>
    %5 = vector.extract_strided_slice %4 {offsets = [0, 0], sizes = [8, 32], strides = [1, 1]} : vector<8x256xf32> to vector<8x32xf32>
    %6 = vector.extract_strided_slice %4 {offsets = [0, 128], sizes = [8, 32], strides = [1, 1]} : vector<8x256xf32> to vector<8x32xf32>
    %c0_7 = arith.constant 0 : index
    %c0_8 = arith.constant 0 : index
    %7 = vector.load %arg5[%c0_7, %c0_8] : memref<32x32xf32, #tpu.memory_space<vmem>>, vector<32x32xf32>
    %cst_9 = arith.constant dense<0.000000e+00> : vector<8x32xf32>
    %8 = tpu.matmul %1, %7, %cst_9 {dimension_numbers = #tpu.dot_dimension_numbers<[1], [0], [0], [1], [0, 0, 1, 1], [], []>} : vector<8x32xf32>, vector<32x32xf32>, vector<8x32xf32> -> vector<8x32xf32>
    %9 = arith.addf %8, %5 : vector<8x32xf32>
    %c0_10 = arith.constant 0 : index
    %c0_11 = arith.constant 0 : index
    %10 = vector.load %arg7[%c0_10, %c0_11] : memref<2x32xf32, #tpu.memory_space<vmem>>, vector<1x32xf32>
    %11 = vector.broadcast %10 : vector<1x32xf32> to vector<8x32xf32>
    %12 = arith.addf %9, %11 : vector<8x32xf32>
    %13 = math.tanh %12 : vector<8x32xf32>
    %c0_12 = arith.constant 0 : index
    %c0_13 = arith.constant 0 : index
    %14 = vector.load %arg6[%c0_12, %c0_13] : memref<32x32xf32, #tpu.memory_space<vmem>>, vector<32x32xf32>
    %cst_14 = arith.constant dense<0.000000e+00> : vector<8x32xf32>
    %15 = tpu.matmul %2, %14, %cst_14 {dimension_numbers = #tpu.dot_dimension_numbers<[1], [0], [0], [1], [0, 0, 1, 1], [], []>} : vector<8x32xf32>, vector<32x32xf32>, vector<8x32xf32> -> vector<8x32xf32>
    %16 = arith.addf %15, %6 : vector<8x32xf32>
    %c1 = arith.constant 1 : index
    %c0_15 = arith.constant 0 : index
    %17 = vector.load %arg7[%c1, %c0_15] : memref<2x32xf32, #tpu.memory_space<vmem>>, vector<1x32xf32>
    %18 = vector.broadcast %17 : vector<1x32xf32> to vector<8x32xf32>
    %19 = arith.addf %16, %18 : vector<8x32xf32>
    %20 = math.tanh %19 : vector<8x32xf32>
    %c0_16 = arith.constant 0 : index
    %c0_17 = arith.constant 0 : index
    %21 = vector.load %arg8[%c0_16, %c0_17] : memref<2x32xf32, #tpu.memory_space<vmem>>, vector<1x32xf32>
    %22 = vector.broadcast %21 : vector<1x32xf32> to vector<8x32xf32>
    %23 = arith.mulf %13, %22 : vector<8x32xf32>
    %cst_18 = arith.constant dense<0.000000e+00> : vector<8xf32>
    %24 = vector.multi_reduction <add>, %23, %cst_18 [1] : vector<8x32xf32> to vector<8xf32>
    %25 = vector.shape_cast %24 : vector<8xf32> to vector<8x1xf32>
    %c0_19 = arith.constant 0 : index
    %26 = memref.load %arg9[%c0_19] : memref<2xf32, #tpu.memory_space<smem>>
    %27 = vector.broadcast %26 : f32 to vector<8x1xf32>
    %28 = arith.addf %25, %27 : vector<8x1xf32>
    %c1_20 = arith.constant 1 : index
    %c0_21 = arith.constant 0 : index
    %29 = vector.load %arg8[%c1_20, %c0_21] : memref<2x32xf32, #tpu.memory_space<vmem>>, vector<1x32xf32>
    %30 = vector.broadcast %29 : vector<1x32xf32> to vector<8x32xf32>
    %31 = arith.mulf %20, %30 : vector<8x32xf32>
    %cst_22 = arith.constant dense<0.000000e+00> : vector<8xf32>
    %32 = vector.multi_reduction <add>, %31, %cst_22 [1] : vector<8x32xf32> to vector<8xf32>
    %33 = vector.shape_cast %32 : vector<8xf32> to vector<8x1xf32>
    %c1_23 = arith.constant 1 : index
    %34 = memref.load %arg9[%c1_23] : memref<2xf32, #tpu.memory_space<smem>>
    %35 = vector.broadcast %34 : f32 to vector<8x1xf32>
    %36 = arith.addf %33, %35 : vector<8x1xf32>
    %cst_24 = arith.constant 2.000000e+00 : f32
    %37 = vector.broadcast %cst_24 : f32 to vector<8x1xf32>
    %38 = arith.mulf %37, %28 : vector<8x1xf32>
    %cst_25 = arith.constant 2.000000e+00 : f32
    %39 = vector.broadcast %cst_25 : f32 to vector<8x1xf32>
    %40 = arith.mulf %39, %36 : vector<8x1xf32>
    %41 = arith.maximumf %38, %40 : vector<8x1xf32>
    %42 = arith.subf %38, %41 : vector<8x1xf32>
    %43 = math.exp %42 : vector<8x1xf32>
    %44 = arith.subf %40, %41 : vector<8x1xf32>
    %45 = math.exp %44 : vector<8x1xf32>
    %46 = arith.addf %43, %45 : vector<8x1xf32>
    %47 = tpu.reciprocal %46 {approx = true} : vector<8x1xf32> -> vector<8x1xf32>
    %48 = arith.mulf %46, %47 : vector<8x1xf32>
    %cst_26 = arith.constant 2.000000e+00 : f32
    %49 = vector.broadcast %cst_26 : f32 to vector<8x1xf32>
    %50 = arith.subf %49, %48 : vector<8x1xf32>
    %51 = arith.mulf %47, %50 : vector<8x1xf32>
    %52 = arith.mulf %43, %51 : vector<8x1xf32>
    %53 = arith.mulf %45, %51 : vector<8x1xf32>
    %54 = vector.broadcast %52 : vector<8x1xf32> to vector<8x32xf32>
    %55 = arith.mulf %54, %1 : vector<8x32xf32>
    %56 = vector.broadcast %53 : vector<8x1xf32> to vector<8x32xf32>
    %57 = arith.mulf %56, %2 : vector<8x32xf32>
    %58 = arith.addf %55, %57 : vector<8x32xf32>
    %c0_27 = arith.constant 0 : index
    %c0_28 = arith.constant 0 : index
    %59 = vector.load %arg10[%c0_27, %c0_28] : memref<8x32xf32, #tpu.memory_space<vmem>>, vector<8x32xf32>
    tpu.vector_store %arg10[%c0_27, %c0_28], %58 {strides = array<i32>} : memref<8x32xf32, #tpu.memory_space<vmem>>, vector<8x32xf32>,
    %60 = tpu.concatenate %52, %53 in 1 : vector<8x1xf32>, vector<8x1xf32> -> vector<8x2xf32>
    %c0_29 = arith.constant 0 : index
    %c0_30 = arith.constant 0 : index
    %61 = vector.load %arg11[%c0_29, %c0_30] : memref<8x2xf32, #tpu.memory_space<vmem>>, vector<8x2xf32>
    tpu.vector_store %arg11[%c0_29, %c0_30], %60 {strides = array<i32>} : memref<8x2xf32, #tpu.memory_space<vmem>>, vector<8x2xf32>,
    return
  }
  func.func @transform_0(%arg0: i32) -> (i32, i32) {
    %c0_i32 = arith.constant 0 : i32
    %c0_i32_0 = arith.constant 0 : i32
    return %arg0, %c0_i32 : i32, i32
  }
  func.func @transform_1(%arg0: i32) -> (i32, i32) {
    %c0_i32 = arith.constant 0 : i32
    %c0_i32_0 = arith.constant 0 : i32
    return %arg0, %c0_i32 : i32, i32
  }
  func.func @transform_2(%arg0: i32) -> (i32, i32) {
    %c0_i32 = arith.constant 0 : i32
    %c0_i32_0 = arith.constant 0 : i32
    return %arg0, %c0_i32 : i32, i32
  }
  func.func @transform_3(%arg0: i32) -> (i32, i32) {
    %c0_i32 = arith.constant 0 : i32
    %c0_i32_0 = arith.constant 0 : i32
    %c0_i32_1 = arith.constant 0 : i32
    return %c0_i32, %c0_i32_0 : i32, i32
  }
  func.func @transform_4(%arg0: i32) -> (i32, i32) {
    %c0_i32 = arith.constant 0 : i32
    %c0_i32_0 = arith.constant 0 : i32
    %c0_i32_1 = arith.constant 0 : i32
    return %c0_i32, %c0_i32_0 : i32, i32
  }
  func.func @transform_5(%arg0: i32) -> (i32, i32) {
    %c0_i32 = arith.constant 0 : i32
    %c0_i32_0 = arith.constant 0 : i32
    %c0_i32_1 = arith.constant 0 : i32
    return %c0_i32, %c0_i32_0 : i32, i32
  }
  func.func @transform_6(%arg0: i32) -> (i32, i32) {
    %c0_i32 = arith.constant 0 : i32
    %c0_i32_0 = arith.constant 0 : i32
    %c0_i32_1 = arith.constant 0 : i32
    return %c0_i32, %c0_i32_0 : i32, i32
  }
  func.func @transform_7(%arg0: i32) -> (i32, i32) {
    %c0_i32 = arith.constant 0 : i32
    %c0_i32_0 = arith.constant 0 : i32
    %c0_i32_1 = arith.constant 0 : i32
    return %c0_i32, %c0_i32_0 : i32, i32
  }
  func.func @transform_8(%arg0: i32) -> i32 {
    %c0_i32 = arith.constant 0 : i32
    %c0_i32_0 = arith.constant 0 : i32
    return %c0_i32 : i32
  }
  func.func @transform_9(%arg0: i32) -> (i32, i32) {
    %c0_i32 = arith.constant 0 : i32
    %c0_i32_0 = arith.constant 0 : i32
    return %arg0, %c0_i32 : i32, i32
  }
  func.func @transform_10(%arg0: i32) -> (i32, i32) {
    %c0_i32 = arith.constant 0 : i32
    %c0_i32_0 = arith.constant 0 : i32
    return %arg0, %c0_i32 : i32, i32
  }
}

</mosaic_0001>

<llo_original>
// kernel: tpu_custom_call.1
$region0: #{tpu_custom_call.1}
  #allocation0 [shape = 'u32[]', space=smem, size = 0x4, offset = 0x4, fixed_abs, tag = 'smem constant byte address 0x4 - core index']
  #allocation1 [shape = 'u32[144,128]{1,0:T(1,128)}', space=vmem, size = 0x12000, scoped, tag = 'internal scratch']
  %s0 = inlined_call_operand.hbm [shape: f32[16,32], index: 0, kind: input, shape index: {}]
  %s1 = inlined_call_operand.hbm [shape: f32[16,32], index: 1, kind: input, shape index: {}]
  %s2 = inlined_call_operand.hbm [shape: f32[16,32], index: 2, kind: input, shape index: {}]
  %s3 = inlined_call_operand.hbm [shape: f32[32,256], index: 3, kind: input, shape index: {}]
  %s4 = inlined_call_operand.hbm [shape: f32[32,32], index: 4, kind: input, shape index: {}]
  %s5 = inlined_call_operand.hbm [shape: f32[32,32], index: 5, kind: input, shape index: {}]
  %s6 = inlined_call_operand.vmem [shape: f32[2,32], index: 6, kind: input, shape index: {}]
  %s7 = inlined_call_operand.vmem [shape: f32[2,32], index: 7, kind: input, shape index: {}]
  %s8 = inlined_call_operand.vmem [shape: f32[2], index: 8, kind: input, shape index: {}]
  %s9 = inlined_call_operand.hbm [shape: f32[16,32], index: 9, kind: output, shape index: {0}]
  %s10 = inlined_call_operand.vmem [shape: f32[16,2], index: 10, kind: output, shape index: {1}]
  %11 = xla_tuple %s9, %s10
  %s12 = sld [smem:[#allocation0]]
  $region105: #{tpu_custom_call.1} parent=0
    _
  %s14 = ssub.s32 1, %s12
  %s15 = scalar_select 0, %s14, %s12
  $region1: #{tpu_custom_call.1} parent=0
    #allocation2 [shape = 'u8[8192]{0}', space=vmem, size = 0x2000, scoped, tag = 'input window, operand 0']
    #allocation3 [shape = 's32[2]{0}', space=sflag, size = 0x8, scoped, tag = 'scoped memory for tpu_custom_call.1']
    #allocation4 [shape = 's32[2]{0}', space=sflag, size = 0x8, scoped, tag = 'scoped memory for tpu_custom_call.1']
    #allocation5 [shape = 's32[2]{0}', space=sflag, size = 0x8, scoped, tag = 'scoped memory for tpu_custom_call.1']
    #allocation6 [shape = 'u8[8192]{0}', space=vmem, size = 0x2000, scoped, tag = 'input window, operand 1']
    #allocation7 [shape = 's32[2]{0}', space=sflag, size = 0x8, scoped, tag = 'scoped memory for tpu_custom_call.1']
    #allocation8 [shape = 'u8[8192]{0}', space=vmem, size = 0x2000, scoped, tag = 'input window, operand 2']
    #allocation9 [shape = 'u8[32768]{0}', space=vmem, size = 0x8000, scoped, tag = 'input window, operand 3, single buffered']
    #allocation10 [shape = 's32[1]{0}', space=sflag, size = 0x4, scoped, tag = 'scoped memory for tpu_custom_call.1']
    #allocation11 [shape = 'u8[16384]{0}', space=vmem, size = 0x4000, scoped, tag = 'input window, operand 4, single buffered']
    #allocation12 [shape = 'u8[16384]{0}', space=vmem, size = 0x4000, scoped, tag = 'input window, operand 5, single buffered']
    #allocation13 [shape = 's32[1]{0}', space=sflag, size = 0x4, scoped, tag = 'scoped memory for tpu_custom_call.1']
    #allocation14 [shape = 'u8[512]{0}', space=smem, size = 0x200, scoped, tag = 'input window, operand 8, single buffered']
    #allocation15 [shape = 'u8[8192]{0}', space=vmem, size = 0x2000, scoped, tag = 'output window, operand 0']
    %16 = vsyncpa [#allocation3], 0
    %s17 = scalar_lea.sflag [#allocation3], 1
    %18 = vsyncpa %s17, 0
    %19 = vsyncpa [#allocation7], 0
    %s20 = scalar_lea.sflag [#allocation7], 1
    %21 = vsyncpa %s20, 0
    %22 = vsyncpa [#allocation10], 0
    %23 = vsyncpa [#allocation13], 0
    %24 = vsyncpa [#allocation5], 0
    %25 = vsyncpa [#allocation4], 0
    %s26 = scalar_lea.sflag [#allocation4], 1
    %27 = vsyncpa %s26, 0
    loop: start=0, step=1, limit=4
    $region2: #{tpu_custom_call.1} parent=1 // loop_pre_header
      _
    $region3: #{tpu_custom_call.1} parent=1 // loop_header
      %s29 = sphi 0, %s33
      %p30 = scmp.ge.s32.totalorder %s29, 4
      %s39 = sphi 0, %s41
      %s42 = sphi 0, %s39
      %s43 = sphi 0, %s42
      %s59 = sphi 0, %s43
      %s65 = sphi 0, %s67
      %s68 = sphi 0, %s65
      %s69 = sphi 0, %s68
      %s85 = sphi 0, %s69
      %s91 = sphi 0, %s93
      %s94 = sphi 0, %s91
      %s95 = sphi 0, %s94
      %s111 = sphi 0, %s95
      %s115 = sphi 0, %s115
      %s117 = sphi 0, %s115
      %s118 = sphi 0, %s117
      %s132 = sphi 0, %s118
      %s136 = sphi 0, %s136
      %s138 = sphi 0, %s136
      %s139 = sphi 0, %s138
      %s153 = sphi 0, %s139
      %s157 = sphi 0, %s157
      %s159 = sphi 0, %s157
      %s160 = sphi 0, %s159
      %s174 = sphi 0, %s160
      %s178 = sphi 0, %s178
      %s180 = sphi 0, %s178
      %s181 = sphi 0, %s180
      %s195 = sphi 0, %s181
      %s199 = sphi 0, %s199
      %s201 = sphi 0, %s199
      %s202 = sphi 0, %s201
      %s216 = sphi 0, %s202
      %s220 = sphi 0, %s220
      %s222 = sphi 0, %s220
      %s223 = sphi 0, %s222
      %s237 = sphi 0, %s223
      %s243 = sphi 0, %s245
      %s246 = sphi 0, %s243
      %s247 = sphi 0, %s246
      %s263 = sphi 0, %s247
      %s269 = sphi 0, %s271
      %s272 = sphi 0, %s269
      %s273 = sphi 0, %s272
      %s289 = sphi 0, %s273
    $region4: #{tpu_custom_call.1} parent=1 // loop_header_branch
      %32 = sbr.rel (%p30) target = $region8
    $region5: #{tpu_custom_call.1} parent=1 // loop_body
      %s34 = ssub.s32 %s29, 1
      %s35 = ssub.s32 %s29, 2
      %s36 = sadd.s32 %s29, 1
      %s37 = ssub.s32 %s29, %s36
      %p38 = scmp.eq.s32.totalorder %s37, 0
      %s40 = sadd.s32 %s39, 1
      %s41 = scalar_select %p38, %s39, %s40
      %p44 = pneg %p38
      %p45 = scmp.eq.s32.totalorder %s29, 1
      %p46 = por %p44, %p45
      %p47 = scmp.ne.s32.totalorder %s39, %s42
      %p48 = scmp.eq.s32.totalorder %s29, 0
      %p49 = por %p47, %p48
      %p50 = scmp.ne.s32.totalorder %s39, %s42
      %p51 = scmp.eq.s32.totalorder %s34, 1
      %p52 = por %p50, %p51
      %p53 = scmp.ne.s32.totalorder %s42, %s43
      %p54 = scmp.eq.s32.totalorder %s34, 0
      %p55 = por %p53, %p54
      %p56 = scmp.ne.s32.totalorder %s42, %s43
      %p57 = scmp.eq.s32.totalorder %s35, 1
      %p58 = por %p56, %p57
      %p60 = scmp.ne.s32.totalorder %s43, %s59
      %p61 = scmp.eq.s32.totalorder %s35, 0
      %p62 = por %p60, %p61
      %s63 = ssub.s32 %s29, %s36
      %p64 = scmp.eq.s32.totalorder %s63, 0
      %s66 = sadd.s32 %s65, 1
      %s67 = scalar_select %p64, %s65, %s66
      %p70 = pneg %p64
      %p71 = scmp.eq.s32.totalorder %s29, 1
      %p72 = por %p70, %p71
      %p73 = scmp.ne.s32.totalorder %s65, %s68
      %p74 = scmp.eq.s32.totalorder %s29, 0
      %p75 = por %p73, %p74
      %p76 = scmp.ne.s32.totalorder %s65, %s68
      %p77 = scmp.eq.s32.totalorder %s34, 1
      %p78 = por %p76, %p77
      %p79 = scmp.ne.s32.totalorder %s68, %s69
      %p80 = scmp.eq.s32.totalorder %s34, 0
      %p81 = por %p79, %p80
      %p82 = scmp.ne.s32.totalorder %s68, %s69
      %p83 = scmp.eq.s32.totalorder %s35, 1
      %p84 = por %p82, %p83
      %p86 = scmp.ne.s32.totalorder %s69, %s85
      %p87 = scmp.eq.s32.totalorder %s35, 0
      %p88 = por %p86, %p87
      %s89 = ssub.s32 %s29, %s36
      %p90 = scmp.eq.s32.totalorder %s89, 0
      %s92 = sadd.s32 %s91, 1
      %s93 = scalar_select %p90, %s91, %s92
      %p96 = pneg %p90
      %p97 = scmp.eq.s32.totalorder %s29, 1
      %p98 = por %p96, %p97
      %p99 = scmp.ne.s32.totalorder %s91, %s94
      %p100 = scmp.eq.s32.totalorder %s29, 0
      %p101 = por %p99, %p100
      %p102 = scmp.ne.s32.totalorder %s91, %s94
      %p103 = scmp.eq.s32.totalorder %s34, 1
      %p104 = por %p102, %p103
      %p105 = scmp.ne.s32.totalorder %s94, %s95
      %p106 = scmp.eq.s32.totalorder %s34, 0
      %p107 = por %p105, %p106
      %p108 = scmp.ne.s32.totalorder %s94, %s95
      %p109 = scmp.eq.s32.totalorder %s35, 1
      %p110 = por %p108, %p109
      %p112 = scmp.ne.s32.totalorder %s95, %s111
      %p113 = scmp.eq.s32.totalorder %s35, 0
      %p114 = por %p112, %p113
      %s116 = sadd.s32 %s115, 1
      %p119 = scmp.eq.s32.totalorder %s29, 1
      %p120 = scmp.ne.s32.totalorder %s115, %s117
      %p121 = scmp.eq.s32.totalorder %s29, 0
      %p122 = por %p120, %p121
      %p123 = scmp.ne.s32.totalorder %s115, %s117
      %p124 = scmp.eq.s32.totalorder %s34, 1
      %p125 = por %p123, %p124
      %p126 = scmp.ne.s32.totalorder %s117, %s118
      %p127 = scmp.eq.s32.totalorder %s34, 0
      %p128 = por %p126, %p127
      %p129 = scmp.ne.s32.totalorder %s117, %s118
      %p130 = scmp.eq.s32.totalorder %s35, 1
      %p131 = por %p129, %p130
      %p133 = scmp.ne.s32.totalorder %s118, %s132
      %p134 = scmp.eq.s32.totalorder %s35, 0
      %p135 = por %p133, %p134
      %s137 = sadd.s32 %s136, 1
      %p140 = scmp.eq.s32.totalorder %s29, 1
      %p141 = scmp.ne.s32.totalorder %s136, %s138
      %p142 = scmp.eq.s32.totalorder %s29, 0
      %p143 = por %p141, %p142
      %p144 = scmp.ne.s32.totalorder %s136, %s138
      %p145 = scmp.eq.s32.totalorder %s34, 1
      %p146 = por %p144, %p145
      %p147 = scmp.ne.s32.totalorder %s138, %s139
      %p148 = scmp.eq.s32.totalorder %s34, 0
      %p149 = por %p147, %p148
      %p150 = scmp.ne.s32.totalorder %s138, %s139
      %p151 = scmp.eq.s32.totalorder %s35, 1
      %p152 = por %p150, %p151
      %p154 = scmp.ne.s32.totalorder %s139, %s153
      %p155 = scmp.eq.s32.totalorder %s35, 0
      %p156 = por %p154, %p155
      %s158 = sadd.s32 %s157, 1
      %p161 = scmp.eq.s32.totalorder %s29, 1
      %p162 = scmp.ne.s32.totalorder %s157, %s159
      %p163 = scmp.eq.s32.totalorder %s29, 0
      %p164 = por %p162, %p163
      %p165 = scmp.ne.s32.totalorder %s157, %s159
      %p166 = scmp.eq.s32.totalorder %s34, 1
      %p167 = por %p165, %p166
      %p168 = scmp.ne.s32.totalorder %s159, %s160
      %p169 = scmp.eq.s32.totalorder %s34, 0
      %p170 = por %p168, %p169
      %p171 = scmp.ne.s32.totalorder %s159, %s160
      %p172 = scmp.eq.s32.totalorder %s35, 1
      %p173 = por %p171, %p172
      %p175 = scmp.ne.s32.totalorder %s160, %s174
      %p176 = scmp.eq.s32.totalorder %s35, 0
      %p177 = por %p175, %p176
      %s179 = sadd.s32 %s178, 1
      %p182 = scmp.eq.s32.totalorder %s29, 1
      %p183 = scmp.ne.s32.totalorder %s178, %s180
      %p184 = scmp.eq.s32.totalorder %s29, 0
      %p185 = por %p183, %p184
      %p186 = scmp.ne.s32.totalorder %s178, %s180
      %p187 = scmp.eq.s32.totalorder %s34, 1
      %p188 = por %p186, %p187
      %p189 = scmp.ne.s32.totalorder %s180, %s181
      %p190 = scmp.eq.s32.totalorder %s34, 0
      %p191 = por %p189, %p190
      %p192 = scmp.ne.s32.totalorder %s180, %s181
      %p193 = scmp.eq.s32.totalorder %s35, 1
      %p194 = por %p192, %p193
      %p196 = scmp.ne.s32.totalorder %s181, %s195
      %p197 = scmp.eq.s32.totalorder %s35, 0
      %p198 = por %p196, %p197
      %s200 = sadd.s32 %s199, 1
      %p203 = scmp.eq.s32.totalorder %s29, 1
      %p204 = scmp.ne.s32.totalorder %s199, %s201
      %p205 = scmp.eq.s32.totalorder %s29, 0
      %p206 = por %p204, %p205
      %p207 = scmp.ne.s32.totalorder %s199, %s201
      %p208 = scmp.eq.s32.totalorder %s34, 1
      %p209 = por %p207, %p208
      %p210 = scmp.ne.s32.totalorder %s201, %s202
      %p211 = scmp.eq.s32.totalorder %s34, 0
      %p212 = por %p210, %p211
      %p213 = scmp.ne.s32.totalorder %s201, %s202
      %p214 = scmp.eq.s32.totalorder %s35, 1
      %p215 = por %p213, %p214
      %p217 = scmp.ne.s32.totalorder %s202, %s216
      %p218 = scmp.eq.s32.totalorder %s35, 0
      %p219 = por %p217, %p218
      %s221 = sadd.s32 %s220, 1
      %p224 = scmp.eq.s32.totalorder %s29, 1
      %p225 = scmp.ne.s32.totalorder %s220, %s222
      %p226 = scmp.eq.s32.totalorder %s29, 0
      %p227 = por %p225, %p226
      %p228 = scmp.ne.s32.totalorder %s220, %s222
      %p229 = scmp.eq.s32.totalorder %s34, 1
      %p230 = por %p228, %p229
      %p231 = scmp.ne.s32.totalorder %s222, %s223
      %p232 = scmp.eq.s32.totalorder %s34, 0
      %p233 = por %p231, %p232
      %p234 = scmp.ne.s32.totalorder %s222, %s223
      %p235 = scmp.eq.s32.totalorder %s35, 1
      %p236 = por %p234, %p235
      %p238 = scmp.ne.s32.totalorder %s223, %s237
      %p239 = scmp.eq.s32.totalorder %s35, 0
      %p240 = por %p238, %p239
      %s241 = ssub.s32 %s29, %s36
      %p242 = scmp.eq.s32.totalorder %s241, 0
      %s244 = sadd.s32 %s243, 1
      %s245 = scalar_select %p242, %s243, %s244
      %p248 = pneg %p242
      %p249 = scmp.eq.s32.totalorder %s29, 1
      %p250 = por %p248, %p249
      %p251 = scmp.ne.s32.totalorder %s243, %s246
      %p252 = scmp.eq.s32.totalorder %s29, 0
      %p253 = por %p251, %p252
      %p254 = scmp.ne.s32.totalorder %s243, %s246
      %p255 = scmp.eq.s32.totalorder %s34, 1
      %p256 = por %p254, %p255
      %p257 = scmp.ne.s32.totalorder %s246, %s247
      %p258 = scmp.eq.s32.totalorder %s34, 0
      %p259 = por %p257, %p258
      %p260 = scmp.ne.s32.totalorder %s246, %s247
      %p261 = scmp.eq.s32.totalorder %s35, 1
      %p262 = por %p260, %p261
      %p264 = scmp.ne.s32.totalorder %s247, %s263
      %p265 = scmp.eq.s32.totalorder %s35, 0
      %p266 = por %p264, %p265
      %s267 = ssub.s32 %s29, %s36
      %p268 = scmp.eq.s32.totalorder %s267, 0
      %s270 = sadd.s32 %s269, 1
      %s271 = scalar_select %p268, %s269, %s270
      %p274 = pneg %p268
      %p275 = scmp.eq.s32.totalorder %s29, 1
      %p276 = por %p274, %p275
      %p277 = scmp.ne.s32.totalorder %s269, %s272
      %p278 = scmp.eq.s32.totalorder %s29, 0
      %p279 = por %p277, %p278
      %p280 = scmp.ne.s32.totalorder %s269, %s272
      %p281 = scmp.eq.s32.totalorder %s34, 1
      %p282 = por %p280, %p281
      %p283 = scmp.ne.s32.totalorder %s272, %s273
      %p284 = scmp.eq.s32.totalorder %s34, 0
      %p285 = por %p283, %p284
      %p286 = scmp.ne.s32.totalorder %s272, %s273
      %p287 = scmp.eq.s32.totalorder %s35, 1
      %p288 = por %p286, %p287
      %p290 = scmp.ne.s32.totalorder %s273, %s289
      %p291 = scmp.eq.s32.totalorder %s35, 0
      %p292 = por %p290, %p291
      %p293 = scmp.le.s32.totalorder 1, %s29
      %p294 = scmp.lt.s32.totalorder %s29, 3
      %p295 = pnand %p293, %p294
      %p296 = pneg %p295
      // Predicated region
      $region9: #{tpu_custom_call.1} parent=5 // pred_check
        _
      $region10: #{tpu_custom_call.1} parent=5 // pred_check_branch
        %298 = sbr.rel (%p295) target = $region12
      $region11: #{tpu_custom_call.1} parent=5 // pred_region
        %s299 = ssub.s32 %s29, 1
        // Predicated region
        $region13: #{tpu_custom_call.1} parent=11 // pred_check
          %p300 = pneg %p128
        $region14: #{tpu_custom_call.1} parent=11 // pred_check_branch
          %302 = sbr.rel (%p300) target = $region16
        $region15: #{tpu_custom_call.1} parent=11 // pred_region
          %s304 = ssub.s32 1024, 1024
          %305 = vsyncadd [#allocation10], %s304
          %s306 = sshll.u32 [#allocation9], 4
          %s307 = int_to_ptr.vmem [resolvable:$true] %s306
          %312 = dma.hbm_to_vmem [thread:$0]  %s3, 1024, %s307, [#allocation10], 256, 256, 16
        $region16: #{tpu_custom_call.1} parent=11 // pred_fallthru
          _
        // Predicated region
        $region17: #{tpu_custom_call.1} parent=11 // pred_check
          %p313 = pneg %p149
        $region18: #{tpu_custom_call.1} parent=11 // pred_check_branch
          %315 = sbr.rel (%p313) target = $region20
        $region19: #{tpu_custom_call.1} parent=11 // pred_region
          %s317 = ssub.s32 512, 512
          %318 = vsyncadd [#allocation10], %s317
          %s319 = sshll.u32 [#allocation11], 4
          %s320 = int_to_ptr.vmem [resolvable:$true] %s319
          %325 = dma.hbm_to_vmem [thread:$0]  %s4, 512, %s320, [#allocation10], 128, 128, 8
        $region20: #{tpu_custom_call.1} parent=11 // pred_fallthru
          _
        // Predicated region
        $region21: #{tpu_custom_call.1} parent=11 // pred_check
          %p326 = pneg %p170
        $region22: #{tpu_custom_call.1} parent=11 // pred_check_branch
          %328 = sbr.rel (%p326) target = $region24
        $region23: #{tpu_custom_call.1} parent=11 // pred_region
          %s330 = ssub.s32 512, 512
          %331 = vsyncadd [#allocation13], %s330
          %s332 = sshll.u32 [#allocation12], 4
          %s333 = int_to_ptr.vmem [resolvable:$true] %s332
          %338 = dma.hbm_to_vmem [thread:$0]  %s5, 512, %s333, [#allocation13], 128, 128, 8
        $region24: #{tpu_custom_call.1} parent=11 // pred_fallthru
          _
        // Predicated region
        $region25: #{tpu_custom_call.1} parent=11 // pred_check
          %p339 = pneg %p191
        $region26: #{tpu_custom_call.1} parent=11 // pred_check_branch
          %341 = sbr.rel (%p339) target = $region28
        $region27: #{tpu_custom_call.1} parent=11 // pred_region
          _
        $region28: #{tpu_custom_call.1} parent=11 // pred_fallthru
          _
        // Predicated region
        $region29: #{tpu_custom_call.1} parent=11 // pred_check
          %p342 = pneg %p212
        $region30: #{tpu_custom_call.1} parent=11 // pred_check_branch
          %344 = sbr.rel (%p342) target = $region32
        $region31: #{tpu_custom_call.1} parent=11 // pred_region
          _
        $region32: #{tpu_custom_call.1} parent=11 // pred_fallthru
          _
        // Predicated region
        $region33: #{tpu_custom_call.1} parent=11 // pred_check
          %p345 = pneg %p233
        $region34: #{tpu_custom_call.1} parent=11 // pred_check_branch
          %347 = sbr.rel (%p345) target = $region36
        $region35: #{tpu_custom_call.1} parent=11 // pred_region
          %s349 = ssub.s32 16, 16
          %350 = vsyncadd [#allocation5], %s349
          %s352 = sshll.u32 %s8, 4
          %s353 = int_to_ptr.vmem [resolvable:$true] %s352
          %355 = dma.vmem_to_smem %s353, 16, [#allocation14], [#allocation5]
        $region36: #{tpu_custom_call.1} parent=11 // pred_fallthru
          _
      $region12: #{tpu_custom_call.1} parent=5 // pred_fallthru
        _
      %p356 = scmp.lt.s32.totalorder %s29, 2
      // Predicated region
      $region37: #{tpu_custom_call.1} parent=5 // pred_check
        %p357 = pneg %p356
      $region38: #{tpu_custom_call.1} parent=5 // pred_check_branch
        %359 = sbr.rel (%p357) target = $region40
      $region39: #{tpu_custom_call.1} parent=5 // pred_region
        // Predicated region
        $region41: #{tpu_custom_call.1} parent=39 // pred_check
          %p360 = pneg %p49
        $region42: #{tpu_custom_call.1} parent=39 // pred_check_branch
          %362 = sbr.rel (%p360) target = $region44
        $region43: #{tpu_custom_call.1} parent=39 // pred_region
          %s363 = sand.u32 %s39, 1
          %s364 = scalar_lea.sflag [#allocation3], %s363
          %s365 = sand.u32 %s39, 1
          %s366 = smul.addr %s365, 8
          %s367 = scalar_lea.vmem [#allocation2], %s366
          %s369 = ssub.s32 128, 128
          %370 = vsyncadd %s364, %s369
          %s371 = smul.addr %s29, 128
          %s372 = scalar_lea.hbm %s0, %s371
          %s374 = sshll.u32 %s367, 4
          %s375 = int_to_ptr.vmem [resolvable:$true] %s374
          %377 = dma.hbm_to_vmem [thread:$0]  %s372, 128, %s375, %s364
        $region44: #{tpu_custom_call.1} parent=39 // pred_fallthru
          _
        // Predicated region
        $region45: #{tpu_custom_call.1} parent=39 // pred_check
          %p378 = pneg %p75
        $region46: #{tpu_custom_call.1} parent=39 // pred_check_branch
          %380 = sbr.rel (%p378) target = $region48
        $region47: #{tpu_custom_call.1} parent=39 // pred_region
          %s381 = sand.u32 %s29, 1
          %s382 = scalar_lea.sflag [#allocation7], %s381
          %s383 = sand.u32 %s65, 1
          %s384 = smul.addr %s383, 8
          %s385 = scalar_lea.vmem [#allocation6], %s384
          %s387 = ssub.s32 128, 128
          %388 = vsyncadd %s382, %s387
          %s389 = smul.addr %s29, 128
          %s390 = scalar_lea.hbm %s1, %s389
          %s392 = sshll.u32 %s385, 4
          %s393 = int_to_ptr.vmem [resolvable:$true] %s392
          %395 = dma.hbm_to_vmem [thread:$0]  %s390, 128, %s393, %s382
        $region48: #{tpu_custom_call.1} parent=39 // pred_fallthru
          _
        // Predicated region
        $region49: #{tpu_custom_call.1} parent=39 // pred_check
          %p396 = pneg %p101
        $region50: #{tpu_custom_call.1} parent=39 // pred_check_branch
          %398 = sbr.rel (%p396) target = $region52
        $region51: #{tpu_custom_call.1} parent=39 // pred_region
          %s399 = sand.u32 %s29, 1
          %s400 = scalar_lea.sflag [#allocation7], %s399
          %s401 = sand.u32 %s91, 1
          %s402 = smul.addr %s401, 8
          %s403 = scalar_lea.vmem [#allocation8], %s402
          %s405 = ssub.s32 128, 128
          %406 = vsyncadd %s400, %s405
          %s407 = smul.addr %s29, 128
          %s408 = scalar_lea.hbm %s2, %s407
          %s410 = sshll.u32 %s403, 4
          %s411 = int_to_ptr.vmem [resolvable:$true] %s410
          %413 = dma.hbm_to_vmem [thread:$0]  %s408, 128, %s411, %s400
        $region52: #{tpu_custom_call.1} parent=39 // pred_fallthru
          _
      $region40: #{tpu_custom_call.1} parent=5 // pred_fallthru
        _
      %p414 = scmp.le.s32.totalorder 1, %s29
      %p415 = scmp.lt.s32.totalorder %s29, 3
      %p416 = pnand %p414, %p415
      %p417 = pneg %p416
      // Predicated region
      $region53: #{tpu_custom_call.1} parent=5 // pred_check
        _
      $region54: #{tpu_custom_call.1} parent=5 // pred_check_branch
        %419 = sbr.rel (%p416) target = $region56
      $region55: #{tpu_custom_call.1} parent=5 // pred_region
        %s420 = ssub.s32 %s29, 1
        %s421 = sand.u32 %s42, 1
        %s422 = scalar_lea.sflag [#allocation3], %s421
        %s423 = sand.u32 %s42, 1
        %s424 = smul.addr %s423, 8
        %s425 = scalar_lea.vmem [#allocation2], %s424
        // Predicated region
        $region57: #{tpu_custom_call.1} parent=55 // pred_check
          %p426 = pneg %p55
        $region58: #{tpu_custom_call.1} parent=55 // pred_check_branch
          %428 = sbr.rel (%p426) target = $region60
        $region59: #{tpu_custom_call.1} parent=55 // pred_region
          %429 = dma.done %s422, 128
        $region60: #{tpu_custom_call.1} parent=55 // pred_fallthru
          _
        %s430 = sand.u32 %s34, 1
        %s431 = scalar_lea.sflag [#allocation7], %s430
        %s432 = sand.u32 %s68, 1
        %s433 = smul.addr %s432, 8
        %s434 = scalar_lea.vmem [#allocation6], %s433
        // Predicated region
        $region61: #{tpu_custom_call.1} parent=55 // pred_check
          %p435 = pneg %p81
        $region62: #{tpu_custom_call.1} parent=55 // pred_check_branch
          %437 = sbr.rel (%p435) target = $region64
        $region63: #{tpu_custom_call.1} parent=55 // pred_region
          %438 = dma.done %s431, 128
        $region64: #{tpu_custom_call.1} parent=55 // pred_fallthru
          _
        %s439 = sand.u32 %s34, 1
        %s440 = scalar_lea.sflag [#allocation7], %s439
        %s441 = sand.u32 %s94, 1
        %s442 = smul.addr %s441, 8
        %s443 = scalar_lea.vmem [#allocation8], %s442
        // Predicated region
        $region65: #{tpu_custom_call.1} parent=55 // pred_check
          %p444 = pneg %p107
        $region66: #{tpu_custom_call.1} parent=55 // pred_check_branch
          %446 = sbr.rel (%p444) target = $region68
        $region67: #{tpu_custom_call.1} parent=55 // pred_region
          %447 = dma.done %s440, 128
        $region68: #{tpu_custom_call.1} parent=55 // pred_fallthru
          _
        // Predicated region
        $region69: #{tpu_custom_call.1} parent=55 // pred_check
          %p448 = pneg %p128
        $region70: #{tpu_custom_call.1} parent=55 // pred_check_branch
          %450 = sbr.rel (%p448) target = $region72
        $region71: #{tpu_custom_call.1} parent=55 // pred_region
          %451 = dma.done [#allocation10], 1024
        $region72: #{tpu_custom_call.1} parent=55 // pred_fallthru
          _
        // Predicated region
        $region73: #{tpu_custom_call.1} parent=55 // pred_check
          %p452 = pneg %p149
        $region74: #{tpu_custom_call.1} parent=55 // pred_check_branch
          %454 = sbr.rel (%p452) target = $region76
        $region75: #{tpu_custom_call.1} parent=55 // pred_region
          %455 = dma.done [#allocation10], 512
        $region76: #{tpu_custom_call.1} parent=55 // pred_fallthru
          _
        // Predicated region
        $region77: #{tpu_custom_call.1} parent=55 // pred_check
          %p456 = pneg %p170
        $region78: #{tpu_custom_call.1} parent=55 // pred_check_branch
          %458 = sbr.rel (%p456) target = $region80
        $region79: #{tpu_custom_call.1} parent=55 // pred_region
          %459 = dma.done [#allocation13], 512
        $region80: #{tpu_custom_call.1} parent=55 // pred_fallthru
          _
        // Predicated region
        $region81: #{tpu_custom_call.1} parent=55 // pred_check
          %p460 = pneg %p233
        $region82: #{tpu_custom_call.1} parent=55 // pred_check_branch
          %462 = sbr.rel (%p460) target = $region84
        $region83: #{tpu_custom_call.1} parent=55 // pred_region
          %463 = dma.done [#allocation5], 16
        $region84: #{tpu_custom_call.1} parent=55 // pred_fallthru
          _
        %464 = sfence
        %s465 = sand.u32 %s42, 1
        %s466 = scalar_lea.sflag [#allocation3], %s465
        %s467 = sand.u32 %s42, 1
        %s468 = smul.addr %s467, 8
        %s469 = scalar_lea.vmem [#allocation2], %s468
        %p470 = pneg %p55
        %p471 = pneg %p52
        %s472 = sand.u32 %s34, 1
        %s473 = scalar_lea.sflag [#allocation7], %s472
        %s474 = sand.u32 %s68, 1
        %s475 = smul.addr %s474, 8
        %s476 = scalar_lea.vmem [#allocation6], %s475
        %p477 = pneg %p81
        %p478 = pneg %p78
        %s479 = sand.u32 %s34, 1
        %s480 = scalar_lea.sflag [#allocation7], %s479
        %s481 = sand.u32 %s94, 1
        %s482 = smul.addr %s481, 8
        %s483 = scalar_lea.vmem [#allocation8], %s482
        %p484 = pneg %p107
        %p485 = pneg %p104
        %p486 = pneg %p128
        %p487 = pneg %p125
        %p488 = pneg %p149
        %p489 = pneg %p146
        %p490 = pneg %p170
        %p491 = pneg %p167
        %p492 = pneg %p191
        %p493 = pneg %p188
        %p494 = pneg %p212
        %p495 = pneg %p209
        %p496 = pneg %p233
        %p497 = pneg %p230
        %p498 = pneg %p259
        %p499 = pneg %p256
        %s500 = sand.u32 %s246, 1
        %s501 = scalar_lea.sflag [#allocation4], %s500
        %s502 = sand.u32 %s246, 1
        %s503 = smul.addr %s502, 8
        %s504 = scalar_lea.vmem [#allocation15], %s503
        %p505 = pneg %p285
        %p506 = pneg %p282
        %p507 = scmp.lt.s32.totalorder %s34, 1
        %s508 = scalar_select %p507, %s34, 1
        %s509 = smul.addr %s508, 8
        %s510 = scalar_lea.vmem %s10, %s509
        %p511 = scmp.lt.s32.totalorder %s34, 1
        %s512 = scalar_select %p511, %s34, 1
        %s513 = smul.addr %s512, 8
        %s514 = scalar_lea.vmem %s10, %s513
        %v515 = vld [vmem:[%s425] sm:$0xff]
        %v516 = vld [vmem:[%s434] sm:$0xff]
        %v517 = vld [vmem:[%s443] sm:$0xff]
        %v518 = vld [vmem:[#allocation9] sm:$0xff]
        %v519 = vld [vmem:[#allocation9 + $0x8] sm:$0xff]
        %v520 = vld [vmem:[#allocation9 + $0x10] sm:$0xff]
        %v521 = vld [vmem:[#allocation9 + $0x18] sm:$0xff]
        %v522 = vld [vmem:[#allocation9 + $0x20] sm:$0xff]
        %v523 = vld [vmem:[#allocation9 + $0x28] sm:$0xff]
        %v524 = vld [vmem:[#allocation9 + $0x30] sm:$0xff]
        %v525 = vld [vmem:[#allocation9 + $0x38] sm:$0xff]
        %vm526 = vcmask 261120
        %v528 = vsel %vm526, %v515, 0
        %530 = vmatprep.subr.mxu0 %v519
        %531 = vmatpush1.msra.mxu0 %v518
        %532 = vmatprep.subr.mxu0 %v521
        %533 = vmatpush1.msra.mxu0 %v520
        %534 = vmatprep.subr.mxu0 %v523
        %535 = vmatpush1.msra.mxu0 %v522
        %536 = vmatprep.subr.mxu0 %v525
        %537 = vmatpush1.msra.mxu0 %v524
        %538 = vmatprep.subr.mxu0 0.0
        %539 = vmatpush1.msra.mxu0 0.0
        %540 = vmatprep.subr.mxu0 0.0
        %541 = vmatpush1.msra.mxu0 0.0
        %542 = vmatprep.subr.mxu0 0.0
        %543 = vmatpush1.msra.mxu0 0.0
        %544 = vmatprep.subr.mxu0 0.0
        %545 = vmatpush1.msra.mxu0 0.0
        %546 = vmatprep.subr.mxu0 0.0
        %547 = vmatpush1.msra.mxu0 0.0
        %548 = vmatprep.subr.mxu0 0.0
        %549 = vmatpush1.msra.mxu0 0.0
        %550 = vmatprep.subr.mxu0 0.0
        %551 = vmatpush1.msra.mxu0 0.0
        %552 = vmatprep.subr.mxu0 0.0
        %553 = vmatpush1.msra.mxu0 0.0
        %554 = vmatprep.subr.mxu0 0.0
        %555 = vmatpush1.msra.mxu0 0.0
        %556 = vmatprep.subr.mxu0 0.0
        %557 = vmatpush1.msra.mxu0 0.0
        %558 = vmatprep.subr.mxu0 0.0
        %559 = vmatpush1.msra.mxu0 0.0
        %560 = vmatprep.subr.mxu0 0.0
        %561 = vmatpush1.msra.mxu0 0.0
        %562 = vmatprep.subr.mxu0 0.0
        %563 = vmatpush1.msra.mxu0 0.0
        %564 = vmatprep.subr.mxu0 0.0
        %565 = vmatpush1.msra.mxu0 0.0
        %566 = vmatprep.subr.mxu0 0.0
        %567 = vmatpush1.msra.mxu0 0.0
        %568 = vmatprep.subr.mxu0 0.0
        %569 = vmatpush1.msra.mxu0 0.0
        %570 = vmatprep.subr.mxu0 0.0
        %571 = vmatpush1.msra.mxu0 0.0
        %572 = vmatprep.subr.mxu0 0.0
        %573 = vmatpush1.msra.mxu0 0.0
        %574 = vmatprep.subr.mxu0 0.0
        %575 = vmatpush1.msra.mxu0 0.0
        %576 = vmatprep.subr.mxu0 0.0
        %577 = vmatpush1.msra.mxu0 0.0
        %578 = vmatprep.subr.mxu0 0.0
        %579 = vmatpush1.msra.mxu0 0.0
        %580 = vmatprep.subr.mxu0 0.0
        %581 = vmatpush1.msra.mxu0 0.0
        %582 = vmatprep.subr.mxu0 0.0
        %583 = vmatpush1.msra.mxu0 0.0
        %584 = vmatprep.subr.mxu0 0.0
        %585 = vmatpush1.msra.mxu0 0.0
        %586 = vmatprep.subr.mxu0 0.0
        %587 = vmatpush1.msra.mxu0 0.0
        %588 = vmatprep.subr.mxu0 0.0
        %589 = vmatpush1.msra.mxu0 0.0
        %590 = vmatprep.subr.mxu0 0.0
        %591 = vmatpush1.msra.mxu0 0.0
        %592 = vmatprep.subr.mxu0 0.0
        %593 = vmatpush1.msra.mxu0 0.0
        %594 = vmatprep.mubr.f32.mxu0 0.0
        %595 = vmatmul.mubr.f32.gmra.mrb[0].mxu0 %v528
        %v596 = vpop.f32.mrb[0].mxu0
        %v597 = vadd.f32 0.0, %v596
        %v598 = vpop.f32.mrb[0].mxu0
        %v599 = vadd.f32 0.0, %v598
        %600 = vdwg.mxu0
        %v601 = vld [vmem:[#allocation11] sm:$0xff]
        %v602 = vld [vmem:[#allocation11 + $0x8] sm:$0xff]
        %v603 = vld [vmem:[#allocation11 + $0x10] sm:$0xff]
        %v604 = vld [vmem:[#allocation11 + $0x18] sm:$0xff]
        %v606 = vsel %vm526, %v516, 0
        %608 = vmatprep.subr.mxu0 0.0
        %609 = vmatpush1.msra.mxu0 %v601
        %610 = vmatprep.subr.mxu0 0.0
        %611 = vmatpush1.msra.mxu0 %v602
        %612 = vmatprep.subr.mxu0 0.0
        %613 = vmatpush1.msra.mxu0 %v603
        %614 = vmatprep.subr.mxu0 0.0
        %615 = vmatpush1.msra.mxu0 %v604
        %616 = vmatprep.subr.mxu0 0.0
        %617 = vmatpush1.msra.mxu0 0.0
        %618 = vmatprep.subr.mxu0 0.0
        %619 = vmatpush1.msra.mxu0 0.0
        %620 = vmatprep.subr.mxu0 0.0
        %621 = vmatpush1.msra.mxu0 0.0
        %622 = vmatprep.subr.mxu0 0.0
        %623 = vmatpush1.msra.mxu0 0.0
        %624 = vmatprep.subr.mxu0 0.0
        %625 = vmatpush1.msra.mxu0 0.0
        %626 = vmatprep.subr.mxu0 0.0
        %627 = vmatpush1.msra.mxu0 0.0
        %628 = vmatprep.subr.mxu0 0.0
        %629 = vmatpush1.msra.mxu0 0.0
        %630 = vmatprep.subr.mxu0 0.0
        %631 = vmatpush1.msra.mxu0 0.0
        %632 = vmatprep.subr.mxu0 0.0
        %633 = vmatpush1.msra.mxu0 0.0
        %634 = vmatprep.subr.mxu0 0.0
        %635 = vmatpush1.msra.mxu0 0.0
        %636 = vmatprep.subr.mxu0 0.0
        %637 = vmatpush1.msra.mxu0 0.0
        %638 = vmatprep.subr.mxu0 0.0
        %639 = vmatpush1.msra.mxu0 0.0
        %640 = vmatprep.subr.mxu0 0.0
        %641 = vmatpush1.msra.mxu0 0.0
        %642 = vmatprep.subr.mxu0 0.0
        %643 = vmatpush1.msra.mxu0 0.0
        %644 = vmatprep.subr.mxu0 0.0
        %645 = vmatpush1.msra.mxu0 0.0
        %646 = vmatprep.subr.mxu0 0.0
        %647 = vmatpush1.msra.mxu0 0.0
        %648 = vmatprep.subr.mxu0 0.0
        %649 = vmatpush1.msra.mxu0 0.0
        %650 = vmatprep.subr.mxu0 0.0
        %651 = vmatpush1.msra.mxu0 0.0
        %652 = vmatprep.subr.mxu0 0.0
        %653 = vmatpush1.msra.mxu0 0.0
        %654 = vmatprep.subr.mxu0 0.0
        %655 = vmatpush1.msra.mxu0 0.0
        %656 = vmatprep.subr.mxu0 0.0
        %657 = vmatpush1.msra.mxu0 0.0
        %658 = vmatprep.subr.mxu0 0.0
        %659 = vmatpush1.msra.mxu0 0.0
        %660 = vmatprep.subr.mxu0 0.0
        %661 = vmatpush1.msra.mxu0 0.0
        %662 = vmatprep.subr.mxu0 0.0
        %663 = vmatpush1.msra.mxu0 0.0
        %664 = vmatprep.subr.mxu0 0.0
        %665 = vmatpush1.msra.mxu0 0.0
        %666 = vmatprep.subr.mxu0 0.0
        %667 = vmatpush1.msra.mxu0 0.0
        %668 = vmatprep.subr.mxu0 0.0
        %669 = vmatpush1.msra.mxu0 0.0
        %670 = vmatprep.subr.mxu0 0.0
        %671 = vmatpush1.msra.mxu0 0.0
        %672 = vmatprep.mubr.f32.mxu0 0.0
        %673 = vmatmul.mubr.f32.gmra.mrb[0].mxu0 %v606
        %v674 = vpop.f32.mrb[0].mxu0
        %v675 = vadd.f32 %v597, %v674
        %v676 = vpop.f32.mrb[0].mxu0
        %677 = vdwg.mxu0
        %v678 = vld [vmem:[%s6] sm:$0x1]
        %v679 = vlaneseq
        %v680 = vshrl.u32 %v679, 7
        %v681 = vsub.s32 0, %v680
        %v682 = vrot.slane %v678, %v681
        %v683 = vadd.f32 %v675, %v682
        %v684 = vtanh.pop %v683
        %v685 = vld [vmem:[#allocation12] sm:$0xff]
        %v686 = vld [vmem:[#allocation12 + $0x8] sm:$0xff]
        %v687 = vld [vmem:[#allocation12 + $0x10] sm:$0xff]
        %v688 = vld [vmem:[#allocation12 + $0x18] sm:$0xff]
        %v690 = vsel %vm526, %v517, 0
        %692 = vmatprep.subr.mxu0 0.0
        %693 = vmatpush1.msra.mxu0 %v685
        %694 = vmatprep.subr.mxu0 0.0
        %695 = vmatpush1.msra.mxu0 %v686
        %696 = vmatprep.subr.mxu0 0.0
        %697 = vmatpush1.msra.mxu0 %v687
        %698 = vmatprep.subr.mxu0 0.0
        %699 = vmatpush1.msra.mxu0 %v688
        %700 = vmatprep.subr.mxu0 0.0
        %701 = vmatpush1.msra.mxu0 0.0
        %702 = vmatprep.subr.mxu0 0.0
        %703 = vmatpush1.msra.mxu0 0.0
        %704 = vmatprep.subr.mxu0 0.0
        %705 = vmatpush1.msra.mxu0 0.0
        %706 = vmatprep.subr.mxu0 0.0
        %707 = vmatpush1.msra.mxu0 0.0
        %708 = vmatprep.subr.mxu0 0.0
        %709 = vmatpush1.msra.mxu0 0.0
        %710 = vmatprep.subr.mxu0 0.0
        %711 = vmatpush1.msra.mxu0 0.0
        %712 = vmatprep.subr.mxu0 0.0
        %713 = vmatpush1.msra.mxu0 0.0
        %714 = vmatprep.subr.mxu0 0.0
        %715 = vmatpush1.msra.mxu0 0.0
        %716 = vmatprep.subr.mxu0 0.0
        %717 = vmatpush1.msra.mxu0 0.0
        %718 = vmatprep.subr.mxu0 0.0
        %719 = vmatpush1.msra.mxu0 0.0
        %720 = vmatprep.subr.mxu0 0.0
        %721 = vmatpush1.msra.mxu0 0.0
        %722 = vmatprep.subr.mxu0 0.0
        %723 = vmatpush1.msra.mxu0 0.0
        %724 = vmatprep.subr.mxu0 0.0
        %725 = vmatpush1.msra.mxu0 0.0
        %726 = vmatprep.subr.mxu0 0.0
        %727 = vmatpush1.msra.mxu0 0.0
        %728 = vmatprep.subr.mxu0 0.0
        %729 = vmatpush1.msra.mxu0 0.0
        %730 = vmatprep.subr.mxu0 0.0
        %731 = vmatpush1.msra.mxu0 0.0
        %732 = vmatprep.subr.mxu0 0.0
        %733 = vmatpush1.msra.mxu0 0.0
        %734 = vmatprep.subr.mxu0 0.0
        %735 = vmatpush1.msra.mxu0 0.0
        %736 = vmatprep.subr.mxu0 0.0
        %737 = vmatpush1.msra.mxu0 0.0
        %738 = vmatprep.subr.mxu0 0.0
        %739 = vmatpush1.msra.mxu0 0.0
        %740 = vmatprep.subr.mxu0 0.0
        %741 = vmatpush1.msra.mxu0 0.0
        %742 = vmatprep.subr.mxu0 0.0
        %743 = vmatpush1.msra.mxu0 0.0
        %744 = vmatprep.subr.mxu0 0.0
        %745 = vmatpush1.msra.mxu0 0.0
        %746 = vmatprep.subr.mxu0 0.0
        %747 = vmatpush1.msra.mxu0 0.0
        %748 = vmatprep.subr.mxu0 0.0
        %749 = vmatpush1.msra.mxu0 0.0
        %750 = vmatprep.subr.mxu0 0.0
        %751 = vmatpush1.msra.mxu0 0.0
        %752 = vmatprep.subr.mxu0 0.0
        %753 = vmatpush1.msra.mxu0 0.0
        %754 = vmatprep.subr.mxu0 0.0
        %755 = vmatpush1.msra.mxu0 0.0
        %756 = vmatprep.mubr.f32.mxu0 0.0
        %757 = vmatmul.mubr.f32.gmra.mrb[0].mxu0 %v690
        %v758 = vpop.f32.mrb[0].mxu0
        %v759 = vadd.f32 %v599, %v758
        %v760 = vpop.f32.mrb[0].mxu0
        %761 = vdwg.mxu0
        %v762 = vld [vmem:[%s6 + $0x1] sm:$0x1]
        %v763 = vlaneseq
        %v764 = vshrl.u32 %v763, 7
        %v765 = vsub.s32 0, %v764
        %v766 = vrot.slane %v762, %v765
        %v767 = vadd.f32 %v759, %v766
        %v768 = vtanh.pop %v767
        %v769 = vld [vmem:[%s7] sm:$0x1]
        %v770 = vlaneseq
        %v771 = vshrl.u32 %v770, 7
        %v772 = vsub.s32 0, %v771
        %v773 = vrot.slane %v769, %v772
        %v774 = vmul.f32 %v684, %v773
        %v775 = vsel %vm526, %v774, 0.0
        %776 = vadd.xlane.f32.xlu0 %v775
        %v777 = vpop.xlane.xlu0 %776
        %s778 = sld [smem:[#allocation14]]
        %v779 = vstv %s778
        %v780 = vadd.f32 %v777, %v779
        %v781 = vld [vmem:[%s7 + $0x1] sm:$0x1]
        %v782 = vlaneseq
        %v783 = vshrl.u32 %v782, 7
        %v784 = vsub.s32 0, %v783
        %v785 = vrot.slane %v781, %v784
        %v786 = vmul.f32 %v768, %v785
        %v787 = vsel %vm526, %v786, 0.0
        %788 = vadd.xlane.f32.xlu0 %v787
        %v789 = vpop.xlane.xlu0 %788
        %s790 = sld [smem:[#allocation14 + $0x1]]
        %v791 = vstv %s790
        %v792 = vadd.f32 %v789, %v791
        %v793 = vmul.f32 %v780, 2.0
        %v794 = vmul.f32 %v792, 2.0
        %v795 = vmax.f32 %v793, %v794
        %v796 = vsub.f32 %v793, %v795
        %v797 = vmul.f32 %v796, 1.442695
        %v798 = vpow.pop %v797
        %v799 = vsub.f32 %v794, %v795
        %v800 = vmul.f32 %v799, 1.442695
        %v801 = vpow.pop %v800
        %v802 = vadd.f32 %v798, %v801
        %v803 = vrcp.pop %v802
        %v804 = vmul.f32 %v802, %v803
        %v805 = vsub.f32 2.0, %v804
        %v806 = vmul.f32 %v803, %v805
        %v807 = vmul.f32 %v798, %v806
        %v808 = vmul.f32 %v801, %v806
        %v809 = vmul.f32 %v807, %v516
        %v810 = vmul.f32 %v808, %v517
        %v811 = vadd.f32 %v809, %v810
        %812 = vst.msk [vmem:[%s504] sm:$0xff] %vm526, %v811
        %vm813 = vcmask 7168
        %v814 = vsel %vm813, %v807, %v808
        %vm815 = vcmask 15360
        %816 = vst.msk [vmem:[%s514] sm:$0xff] %vm815, %v814
        %s817 = sand.u32 %s246, 1
        %s818 = scalar_lea.sflag [#allocation4], %s817
        %s819 = sand.u32 %s246, 1
        %s820 = smul.addr %s819, 8
        %s821 = scalar_lea.vmem [#allocation15], %s820
        %p822 = scmp.lt.s32.totalorder %s34, 1
        %s823 = scalar_select %p822, %s34, 1
        %s824 = smul.addr %s823, 8
        %s825 = scalar_lea.vmem %s10, %s824
        // Predicated region
        $region85: #{tpu_custom_call.1} parent=55 // pred_check
          %p826 = pneg %p256
        $region86: #{tpu_custom_call.1} parent=55 // pred_check_branch
          %828 = sbr.rel (%p826) target = $region88
        $region87: #{tpu_custom_call.1} parent=55 // pred_region
          %s830 = ssub.s32 128, 128
          %831 = vsyncadd %s818, %s830
          %s832 = smul.addr %s34, 128
          %s833 = scalar_lea.hbm %s9, %s832
          %s835 = sshll.u32 %s821, 4
          %s836 = int_to_ptr.vmem [resolvable:$true] %s835
          %838 = dma.vmem_to_hbm [thread:$0]  %s836, 128, %s833, %s818
        $region88: #{tpu_custom_call.1} parent=55 // pred_fallthru
          _
        // Predicated region
        $region89: #{tpu_custom_call.1} parent=55 // pred_check
          %p839 = pneg %p282
        $region90: #{tpu_custom_call.1} parent=55 // pred_check_branch
          %841 = sbr.rel (%p839) target = $region92
        $region91: #{tpu_custom_call.1} parent=55 // pred_region
          _
        $region92: #{tpu_custom_call.1} parent=55 // pred_fallthru
          _
      $region56: #{tpu_custom_call.1} parent=5 // pred_fallthru
        _
      %p842 = scmp.le.s32.totalorder 2, %s29
      // Predicated region
      $region93: #{tpu_custom_call.1} parent=5 // pred_check
        %p843 = pneg %p842
      $region94: #{tpu_custom_call.1} parent=5 // pred_check_branch
        %845 = sbr.rel (%p843) target = $region96
      $region95: #{tpu_custom_call.1} parent=5 // pred_region
        %s846 = ssub.s32 %s29, 2
        // Predicated region
        $region97: #{tpu_custom_call.1} parent=95 // pred_check
          %p847 = pneg %p262
        $region98: #{tpu_custom_call.1} parent=95 // pred_check_branch
          %849 = sbr.rel (%p847) target = $region100
        $region99: #{tpu_custom_call.1} parent=95 // pred_region
          %s850 = sand.u32 %s247, 1
          %s851 = scalar_lea.sflag [#allocation4], %s850
          %s852 = sand.u32 %s247, 1
          %s853 = smul.addr %s852, 8
          %s854 = scalar_lea.vmem [#allocation15], %s853
          %855 = dma.done %s851, 128
        $region100: #{tpu_custom_call.1} parent=95 // pred_fallthru
          _
        // Predicated region
        $region101: #{tpu_custom_call.1} parent=95 // pred_check
          %p856 = pneg %p288
        $region102: #{tpu_custom_call.1} parent=95 // pred_check_branch
          %858 = sbr.rel (%p856) target = $region104
        $region103: #{tpu_custom_call.1} parent=95 // pred_region
          %p859 = scmp.lt.s32.totalorder %s35, 1
          %s860 = scalar_select %p859, %s35, 1
          %s861 = smul.addr %s860, 8
          %s862 = scalar_lea.vmem %s10, %s861
        $region104: #{tpu_custom_call.1} parent=95 // pred_fallthru
          _
      $region96: #{tpu_custom_call.1} parent=5 // pred_fallthru
        _
    $region6: #{tpu_custom_call.1} parent=1 // loop_footer
      %s33 = sadd.s32 1, %s29
    $region7: #{tpu_custom_call.1} parent=1 // loop_footer_branch
      %28 = sbr.rel target = $region3
    $region8: #{tpu_custom_call.1} parent=1 // loop_exit
      _
    %863 = vsyncpa [#allocation3], 1
    %s864 = scalar_lea.sflag [#allocation3], 1
    %865 = vsyncpa %s864, 1
    %866 = vsyncpa [#allocation7], 1
    %s867 = scalar_lea.sflag [#allocation7], 1
    %868 = vsyncpa %s867, 1
    %869 = vsyncpa [#allocation10], 1
    %870 = vsyncpa [#allocation13], 1
    %871 = vsyncpa [#allocation4], 1
    %s872 = scalar_lea.sflag [#allocation4], 1
    %873 = vsyncpa %s872, 1
    %874 = vsyncpa [#allocation5], 1
    %s875 = scalar_lea.sflag [#allocation5], 1
    %876 = vsyncpa %s875, 1

</llo_original>
